<compile_context>
chip_gen: v7x
topology: tpu7x:2x2x1
jax: 0.10.0
libtpu: 0.0.40
codegen_flags: <defaults>
</compile_context>

<pallas_src>
import jax
import jax.numpy as jnp
from jax.experimental import pallas as pl
from jax.experimental.pallas import tpu as pltpu


def hgnn_conv1_kernel(feats_ref, w_ref, b_ref, g_ref, out_ref):
    k = pl.program_id(1)

    @pl.when(k == 0)
    def _():
        out_ref[...] = jnp.zeros_like(out_ref)

    # Stage 1 for this k-block: h = relu(feats_blk @ W + b).
    # bf16 MXU inputs, f32 accumulation; bias add + ReLU in f32.
    h = jnp.dot(feats_ref[...], w_ref[...], preferred_element_type=jnp.float32)
    h = jnp.maximum(h + b_ref[...], 0.0).astype(jnp.bfloat16)

    # Stage 2 partial sum directly into the resident f32 output block:
    #   out[i-block, :] += G[i-block, k-block] @ h[k-block, :]
    # G block arrives as f32 from HBM and is cast to bf16 here (VPU cast).
    out_ref[...] += jnp.dot(g_ref[...].astype(jnp.bfloat16), h,
                            preferred_element_type=jnp.float32)

    # TODO(synk): dropout(p=0.5) is identity in eval mode; a training-mode path
    # would need a Bernoulli mask (pltpu.prng_seed + pltpu.stateful_bernoulli)
    # AND the 1/(1-p) rescale, and cannot bit-match torch's RNG anyway.


def _round_up(x, m):
    return ((x + m - 1) // m) * m


def _tile_and_pad(n, t, align):
    """Effective tile size (multiple of `align`) and zero-padded extent."""
    n_a = _round_up(n, align)
    if n_a <= t:
        return n_a, n_a               # one tile covering the (padded) extent
    return t, _round_up(n, t)         # full-size tiles, pad N up to a multiple


def hgnn_conv1(feats, w, b, g, *, tm=512, tk=1024):
    """HGNN_conv1 forward.

    feats: [N, Din] f32, w: [Dout, Din] (torch nn.Linear layout), b: [Dout],
    g: [N, N] f32.  Returns [N, Dout] f32 = G @ relu(feats @ W^T + b).
    """
    n, din = feats.shape
    dout = w.shape[0]
    assert g.shape == (n, n)
    assert tm % 128 == 0 and tk % 128 == 0

    dout_p = _round_up(dout, 128)                    # lane-dense out_ft

    # Row (i) tiles over output rows of G; k tiles over the reduction axis.
    tm_eff, n_rows = _tile_and_pad(n, tm, 128)
    tk_eff, n_cols = _tile_and_pad(n, tk, 128)

    # Parameters: W^T zero-padded to dout_p (bf16 MXU input), f32 bias row.
    # Padded output columns are provably zero through relu and G@h.
    w_t = jnp.zeros((din, dout_p), jnp.bfloat16).at[:, :dout].set(
        w.T.astype(jnp.bfloat16))
    b_p = jnp.zeros((1, dout_p), jnp.float32).at[:, :dout].set(
        b.astype(jnp.float32))

    # feats: bf16, rows zero-padded to the reduction extent.  Padded rows give
    # h = relu(b) but the matching G columns are zero, so they contribute 0.
    feats_bf = feats.astype(jnp.bfloat16)
    if n_cols != n:
        feats_bf = jnp.zeros((n_cols, din), jnp.bfloat16).at[:n, :].set(feats_bf)

    # G stays in its original dtype (no wrapper-side convert pass over the
    # dominant HBM stream); pad only when N is not a multiple of the tiles.
    g_in = g
    if n_rows != n or n_cols != n:
        g_in = jnp.zeros((n_rows, n_cols), g.dtype).at[:n, :n].set(g)

    # Generation-aware VMEM limit: use most of the 128 MiB on v5e/v6e, keep
    # ~8 MiB headroom on v7x's 64 MiB.
    try:
        vmem_cap = pltpu.get_tpu_info().vmem_capacity_bytes
    except Exception:  # conservative fallback if the query is unavailable
        vmem_cap = 64 * 1024 * 1024
    vmem_limit = max(32 * 1024 * 1024,
                     min(vmem_cap - 8 * 1024 * 1024, 112 * 1024 * 1024))

    grid = (n_rows // tm_eff, n_cols // tk_eff)

    out_p = pl.pallas_call(
        hgnn_conv1_kernel,
        out_shape=jax.ShapeDtypeStruct((n_rows, dout_p), jnp.float32),
        grid=grid,
        in_specs=[
            pl.BlockSpec((tk_eff, din), lambda i, k: (k, 0)),      # feats (streamed over k)
            pl.BlockSpec((din, dout_p), lambda i, k: (0, 0)),      # W^T   (resident)
            pl.BlockSpec((1, dout_p), lambda i, k: (0, 0)),        # bias  (resident)
            pl.BlockSpec((tm_eff, tk_eff), lambda i, k: (i, k)),   # G     (streamed, f32)
        ],
        out_specs=pl.BlockSpec((tm_eff, dout_p), lambda i, k: (i, 0)),
        compiler_params=pltpu.CompilerParams(
            dimension_semantics=("parallel", "arbitrary"),
            vmem_limit_bytes=vmem_limit,
        ),
    )(feats_bf, w_t, b_p, g_in)
    return out_p[:n, :dout]


if __name__ == "__main__":
    # Small shapes consistent with the module: N nodes, in_ft -> out_ft.
    N, IN_FT, OUT_FT = 256, 32, 64
    key = jax.random.PRNGKey(0)
    k_feats, k_g, k_w, k_b = jax.random.split(key, 4)

    feats = jax.random.normal(k_feats, (N, IN_FT), dtype=jnp.float32)
    G = jax.random.normal(k_g, (N, N), dtype=jnp.float32)

    # Deterministic nn.Linear-style init: U(-1/sqrt(in_ft), 1/sqrt(in_ft)).
    bound = 1.0 / (IN_FT ** 0.5)
    W = jax.random.uniform(k_w, (OUT_FT, IN_FT), jnp.float32, -bound, bound)
    b = jax.random.uniform(k_b, (OUT_FT,), jnp.float32, -bound, bound)

    def check(n_nodes, tm, tk):
        f = feats[:n_nodes]
        g = G[:n_nodes, :n_nodes]
        out = jax.block_until_ready(hgnn_conv1(f, W, b, g, tm=tm, tk=tk))
        # Pure-JAX f32 reference; kernel uses bf16 MXU inputs, so compare with
        # a scale-relative tolerance.
        ref = jnp.dot(g, jnp.maximum(jnp.dot(f, W.T) + b, 0.0))
        assert out.shape == (n_nodes, OUT_FT), out.shape
        err = float(jnp.max(jnp.abs(out - ref)))
        scale = float(jnp.max(jnp.abs(ref)))
        assert err <= 2e-2 * scale + 1e-3, (n_nodes, tm, tk, err, scale)

    check(256, 128, 128)    # grid (2, 2): exercises the k-axis accumulation path
    check(200, 128, 128)    # non-multiple N: exercises the zero-padding path
    check(256, 512, 1024)   # default large tiles (clamped to a single tile)
    print("KERNEL_OK")
</pallas_src>

<mosaic_0001>
module attributes {stable_mosaic.version = 11 : i64} {
  func.func @hgnn_conv1_kernel(%arg0: i32, %arg1: i32, %arg2: memref<128x32xbf16, #tpu.memory_space<vmem>>, %arg3: memref<32x128xbf16, #tpu.memory_space<vmem>>, %arg4: memref<1x128xf32, #tpu.memory_space<vmem>>, %arg5: memref<128x128xf32, #tpu.memory_space<vmem>>, %arg6: memref<128x128xf32, #tpu.memory_space<vmem>>) attributes {dimension_semantics = [#tpu.dimension_semantics<parallel>, #tpu.dimension_semantics<arbitrary>], iteration_bounds = array<i64: 2, 2>, scalar_prefetch = 0 : i64, scratch_operands = 0 : i64, tpu.core_type = #tpu.core_type<tc>, window_params = [{transform_indices = @transform_0, window_bounds = array<i64: 128, 32>}, {pipeline_mode = #tpu.pipeline_mode<synchronous>, transform_indices = @transform_1, window_bounds = array<i64: 32, 128>}, {pipeline_mode = #tpu.pipeline_mode<synchronous>, transform_indices = @transform_2, window_bounds = array<i64: 1, 128>}, {transform_indices = @transform_3, window_bounds = array<i64: 128, 128>}, {transform_indices = @transform_4, window_bounds = array<i64: 128, 128>}]} {
    %c0_i32 = arith.constant 0 : i32
    %0 = arith.cmpi eq, %arg1, %c0_i32 : i32
    %1 = arith.extui %0 : i1 to i32
    %c0_i32_0 = arith.constant 0 : i32
    %2 = arith.cmpi ne, %1, %c0_i32_0 : i32
    scf.if %2 {
      %cst_14 = arith.constant 0.000000e+00 : f32
      %18 = vector.broadcast %cst_14 : f32 to vector<128x128xf32>
      %c0_15 = arith.constant 0 : index
      %c0_16 = arith.constant 0 : index
      %19 = vector.load %arg6[%c0_15, %c0_16] : memref<128x128xf32, #tpu.memory_space<vmem>>, vector<128x128xf32>
      tpu.vector_store %arg6[%c0_15, %c0_16], %18 {strides = array<i32>} : memref<128x128xf32, #tpu.memory_space<vmem>>, vector<128x128xf32>,
    } else {
    }
    %c0 = arith.constant 0 : index
    %c0_1 = arith.constant 0 : index
    %3 = vector.load %arg2[%c0, %c0_1] : memref<128x32xbf16, #tpu.memory_space<vmem>>, vector<128x32xbf16>
    %c0_2 = arith.constant 0 : index
    %c0_3 = arith.constant 0 : index
    %4 = vector.load %arg3[%c0_2, %c0_3] : memref<32x128xbf16, #tpu.memory_space<vmem>>, vector<32x128xbf16>
    %cst = arith.constant dense<0.000000e+00> : vector<128x128xf32>
    %5 = tpu.matmul %3, %4, %cst {dimension_numbers = #tpu.dot_dimension_numbers<[1], [0], [0], [1], [0, 0, 1, 1], [], []>} : vector<128x32xbf16>, vector<32x128xbf16>, vector<128x128xf32> -> vector<128x128xf32>
    %c0_4 = arith.constant 0 : index
    %c0_5 = arith.constant 0 : index
    %6 = vector.load %arg4[%c0_4, %c0_5] : memref<1x128xf32, #tpu.memory_space<vmem>>, vector<1x128xf32>
    %7 = vector.broadcast %6 : vector<1x128xf32> to vector<128x128xf32>
    %8 = arith.addf %5, %7 : vector<128x128xf32>
    %cst_6 = arith.constant 0.000000e+00 : f32
    %9 = vector.broadcast %cst_6 : f32 to vector<128x128xf32>
    %10 = arith.maximumf %8, %9 : vector<128x128xf32>
    %11 = arith.truncf %10 : vector<128x128xf32> to vector<128x128xbf16>
    %c0_7 = arith.constant 0 : index
    %c0_8 = arith.constant 0 : index
    %12 = vector.load %arg6[%c0_7, %c0_8] : memref<128x128xf32, #tpu.memory_space<vmem>>, vector<128x128xf32>
    %c0_9 = arith.constant 0 : index
    %c0_10 = arith.constant 0 : index
    %13 = vector.load %arg5[%c0_9, %c0_10] : memref<128x128xf32, #tpu.memory_space<vmem>>, vector<128x128xf32>
    %14 = arith.truncf %13 : vector<128x128xf32> to vector<128x128xbf16>
    %cst_11 = arith.constant dense<0.000000e+00> : vector<128x128xf32>
    %15 = tpu.matmul %14, %11, %cst_11 {dimension_numbers = #tpu.dot_dimension_numbers<[1], [0], [0], [1], [0, 0, 1, 1], [], []>} : vector<128x128xbf16>, vector<128x128xbf16>, vector<128x128xf32> -> vector<128x128xf32>
    %16 = arith.addf %12, %15 : vector<128x128xf32>
    %c0_12 = arith.constant 0 : index
    %c0_13 = arith.constant 0 : index
    %17 = vector.load %arg6[%c0_12, %c0_13] : memref<128x128xf32, #tpu.memory_space<vmem>>, vector<128x128xf32>
    tpu.vector_store %arg6[%c0_12, %c0_13], %16 {strides = array<i32>} : memref<128x128xf32, #tpu.memory_space<vmem>>, vector<128x128xf32>,
    return
  }
  func.func @transform_0(%arg0: i32, %arg1: i32) -> (i32, i32) {
    %c0_i32 = arith.constant 0 : i32
    %c0_i32_0 = arith.constant 0 : i32
    return %arg1, %c0_i32 : i32, i32
  }
  func.func @transform_1(%arg0: i32, %arg1: i32) -> (i32, i32) {
    %c0_i32 = arith.constant 0 : i32
    %c0_i32_0 = arith.constant 0 : i32
    %c0_i32_1 = arith.constant 0 : i32
    return %c0_i32, %c0_i32_0 : i32, i32
  }
  func.func @transform_2(%arg0: i32, %arg1: i32) -> (i32, i32) {
    %c0_i32 = arith.constant 0 : i32
    %c0_i32_0 = arith.constant 0 : i32
    %c0_i32_1 = arith.constant 0 : i32
    return %c0_i32, %c0_i32_0 : i32, i32
  }
  func.func @transform_3(%arg0: i32, %arg1: i32) -> (i32, i32) {
    %c0_i32 = arith.constant 0 : i32
    return %arg0, %arg1 : i32, i32
  }
  func.func @transform_4(%arg0: i32, %arg1: i32) -> (i32, i32) {
    %c0_i32 = arith.constant 0 : i32
    %c0_i32_0 = arith.constant 0 : i32
    return %arg0, %c0_i32 : i32, i32
  }
}

</mosaic_0001>

<llo_original>
// kernel: tpu_custom_call.1
$region0: #{tpu_custom_call.1}
  #allocation0 [shape = 'u32[]', space=smem, size = 0x4, offset = 0x4, fixed_abs, tag = 'smem constant byte address 0x4 - core index']
  #allocation1 [shape = 'u32[144,128]{1,0:T(1,128)}', space=vmem, size = 0x12000, scoped, tag = 'internal scratch']
  %s0 = inlined_call_operand.vmem [shape: bf16[256,32], index: 0, kind: input, shape index: {}]
  %s1 = inlined_call_operand.vmem [shape: bf16[32,128], index: 1, kind: input, shape index: {}]
  %s2 = inlined_call_operand.vmem [shape: f32[1,128], index: 2, kind: input, shape index: {}]
  %s3 = inlined_call_operand.hbm [shape: f32[256,256], index: 3, kind: input, shape index: {}]
  %s4 = inlined_call_operand.hbm [shape: f32[256,128], index: 4, kind: output, shape index: {}]
  %s5 = sld [smem:[#allocation0]]
  $region57: #{tpu_custom_call.1} parent=0
    _
  %s7 = ssub.s32 1, %s5
  %s8 = scalar_select 0, %s7, %s5
  $region1: #{tpu_custom_call.1} parent=0
    #allocation2 [shape = 'u8[131072]{0}', space=vmem, size = 0x20000, scoped, tag = 'input window, operand 3']
    #allocation3 [shape = 's32[2]{0}', space=sflag, size = 0x8, scoped, tag = 'scoped memory for tpu_custom_call.1']
    #allocation4 [shape = 's32[2]{0}', space=sflag, size = 0x8, scoped, tag = 'scoped memory for tpu_custom_call.1']
    #allocation5 [shape = 'u8[131072]{0}', space=vmem, size = 0x20000, scoped, tag = 'output window, operand 0']
    %9 = vsyncpa [#allocation3], 0
    %s10 = scalar_lea.sflag [#allocation3], 1
    %11 = vsyncpa %s10, 0
    %12 = vsyncpa [#allocation4], 0
    %s13 = scalar_lea.sflag [#allocation4], 1
    %14 = vsyncpa %s13, 0
    loop: start=0, step=1, limit=6
    $region2: #{tpu_custom_call.1} parent=1 // loop_pre_header
      _
    $region3: #{tpu_custom_call.1} parent=1 // loop_header
      %s16 = sphi 0, %s20
      %p17 = scmp.ge.s32.totalorder %s16, 6
      %s23 = sphi 0, %s35
      %s24 = sphi 0, %s31
      %s25 = sphi 0, %s23
      %s26 = sphi 0, %s24
      %s27 = sphi 0, %s25
      %s28 = sphi 0, %s26
      %s38 = sphi 0, %s40
      %s41 = sphi 0, %s38
      %s42 = sphi 0, %s41
      %s58 = sphi 0, %s42
      %s62 = sphi 0, %s62
      %s64 = sphi 0, %s62
      %s65 = sphi 0, %s64
      %s79 = sphi 0, %s65
      %s83 = sphi 0, %s83
      %s85 = sphi 0, %s83
      %s86 = sphi 0, %s85
      %s100 = sphi 0, %s86
      %s108 = sphi 0, %s110
      %s111 = sphi 0, %s108
      %s112 = sphi 0, %s111
      %s128 = sphi 0, %s112
      %s134 = sphi 0, %s136
      %s137 = sphi 0, %s134
      %s138 = sphi 0, %s137
      %s154 = sphi 0, %s138
    $region4: #{tpu_custom_call.1} parent=1 // loop_header_branch
      %19 = sbr.rel (%p17) target = $region8
    $region5: #{tpu_custom_call.1} parent=1 // loop_body
      %s21 = ssub.s32 %s16, 1
      %s22 = ssub.s32 %s16, 2
      %s29 = sadd.s32 1, %s24
      %p30 = scmp.ge.s32.totalorder %s29, 2
      %s31 = scalar_select %p30, 0, %s29
      %s32 = sadd.s32 1, %s23
      %s33 = scalar_select %p30, %s32, %s23
      %p34 = scmp.ge.s32.totalorder %s33, 2
      %s35 = scalar_select %p34, 0, %s33
      %s36 = ssub.s32 %s24, %s31
      %p37 = scmp.eq.s32.totalorder %s36, 0
      %s39 = sadd.s32 %s38, 1
      %s40 = scalar_select %p37, %s38, %s39
      %p43 = pneg %p37
      %p44 = scmp.eq.s32.totalorder %s16, 3
      %p45 = por %p43, %p44
      %p46 = scmp.ne.s32.totalorder %s38, %s41
      %p47 = scmp.eq.s32.totalorder %s16, 0
      %p48 = por %p46, %p47
      %p49 = scmp.ne.s32.totalorder %s38, %s41
      %p50 = scmp.eq.s32.totalorder %s21, 3
      %p51 = por %p49, %p50
      %p52 = scmp.ne.s32.totalorder %s41, %s42
      %p53 = scmp.eq.s32.totalorder %s21, 0
      %p54 = por %p52, %p53
      %p55 = scmp.ne.s32.totalorder %s41, %s42
      %p56 = scmp.eq.s32.totalorder %s22, 3
      %p57 = por %p55, %p56
      %p59 = scmp.ne.s32.totalorder %s42, %s58
      %p60 = scmp.eq.s32.totalorder %s22, 0
      %p61 = por %p59, %p60
      %s63 = sadd.s32 %s62, 1
      %p66 = scmp.eq.s32.totalorder %s16, 3
      %p67 = scmp.ne.s32.totalorder %s62, %s64
      %p68 = scmp.eq.s32.totalorder %s16, 0
      %p69 = por %p67, %p68
      %p70 = scmp.ne.s32.totalorder %s62, %s64
      %p71 = scmp.eq.s32.totalorder %s21, 3
      %p72 = por %p70, %p71
      %p73 = scmp.ne.s32.totalorder %s64, %s65
      %p74 = scmp.eq.s32.totalorder %s21, 0
      %p75 = por %p73, %p74
      %p76 = scmp.ne.s32.totalorder %s64, %s65
      %p77 = scmp.eq.s32.totalorder %s22, 3
      %p78 = por %p76, %p77
      %p80 = scmp.ne.s32.totalorder %s65, %s79
      %p81 = scmp.eq.s32.totalorder %s22, 0
      %p82 = por %p80, %p81
      %s84 = sadd.s32 %s83, 1
      %p87 = scmp.eq.s32.totalorder %s16, 3
      %p88 = scmp.ne.s32.totalorder %s83, %s85
      %p89 = scmp.eq.s32.totalorder %s16, 0
      %p90 = por %p88, %p89
      %p91 = scmp.ne.s32.totalorder %s83, %s85
      %p92 = scmp.eq.s32.totalorder %s21, 3
      %p93 = por %p91, %p92
      %p94 = scmp.ne.s32.totalorder %s85, %s86
      %p95 = scmp.eq.s32.totalorder %s21, 0
      %p96 = por %p94, %p95
      %p97 = scmp.ne.s32.totalorder %s85, %s86
      %p98 = scmp.eq.s32.totalorder %s22, 3
      %p99 = por %p97, %p98
      %p101 = scmp.ne.s32.totalorder %s86, %s100
      %p102 = scmp.eq.s32.totalorder %s22, 0
      %p103 = por %p101, %p102
      %s104 = ssub.s32 %s23, %s35
      %s105 = ssub.s32 %s24, %s31
      %s106 = sor.u32 %s104, %s105
      %p107 = scmp.eq.s32.totalorder %s106, 0
      %s109 = sadd.s32 %s108, 1
      %s110 = scalar_select %p107, %s108, %s109
      %p113 = pneg %p107
      %p114 = scmp.eq.s32.totalorder %s16, 3
      %p115 = por %p113, %p114
      %p116 = scmp.ne.s32.totalorder %s108, %s111
      %p117 = scmp.eq.s32.totalorder %s16, 0
      %p118 = por %p116, %p117
      %p119 = scmp.ne.s32.totalorder %s108, %s111
      %p120 = scmp.eq.s32.totalorder %s21, 3
      %p121 = por %p119, %p120
      %p122 = scmp.ne.s32.totalorder %s111, %s112
      %p123 = scmp.eq.s32.totalorder %s21, 0
      %p124 = por %p122, %p123
      %p125 = scmp.ne.s32.totalorder %s111, %s112
      %p126 = scmp.eq.s32.totalorder %s22, 3
      %p127 = por %p125, %p126
      %p129 = scmp.ne.s32.totalorder %s112, %s128
      %p130 = scmp.eq.s32.totalorder %s22, 0
      %p131 = por %p129, %p130
      %s132 = ssub.s32 %s23, %s35
      %p133 = scmp.eq.s32.totalorder %s132, 0
      %s135 = sadd.s32 %s134, 1
      %s136 = scalar_select %p133, %s134, %s135
      %p139 = pneg %p133
      %p140 = scmp.eq.s32.totalorder %s16, 3
      %p141 = por %p139, %p140
      %p142 = scmp.ne.s32.totalorder %s134, %s137
      %p143 = scmp.eq.s32.totalorder %s16, 0
      %p144 = por %p142, %p143
      %p145 = scmp.ne.s32.totalorder %s134, %s137
      %p146 = scmp.eq.s32.totalorder %s21, 3
      %p147 = por %p145, %p146
      %p148 = scmp.ne.s32.totalorder %s137, %s138
      %p149 = scmp.eq.s32.totalorder %s21, 0
      %p150 = por %p148, %p149
      %p151 = scmp.ne.s32.totalorder %s137, %s138
      %p152 = scmp.eq.s32.totalorder %s22, 3
      %p153 = por %p151, %p152
      %p155 = scmp.ne.s32.totalorder %s138, %s154
      %p156 = scmp.eq.s32.totalorder %s22, 0
      %p157 = por %p155, %p156
      %p158 = scmp.le.s32.totalorder 1, %s16
      %p159 = scmp.lt.s32.totalorder %s16, 5
      %p160 = pnand %p158, %p159
      %p161 = pneg %p160
      // Predicated region
      $region9: #{tpu_custom_call.1} parent=5 // pred_check
        _
      $region10: #{tpu_custom_call.1} parent=5 // pred_check_branch
        %163 = sbr.rel (%p160) target = $region12
      $region11: #{tpu_custom_call.1} parent=5 // pred_region
        %s164 = ssub.s32 %s16, 1
        // Predicated region
        $region13: #{tpu_custom_call.1} parent=11 // pred_check
          %p165 = pneg %p75
        $region14: #{tpu_custom_call.1} parent=11 // pred_check_branch
          %167 = sbr.rel (%p165) target = $region16
        $region15: #{tpu_custom_call.1} parent=11 // pred_region
          _
        $region16: #{tpu_custom_call.1} parent=11 // pred_fallthru
          _
        // Predicated region
        $region17: #{tpu_custom_call.1} parent=11 // pred_check
          %p168 = pneg %p96
        $region18: #{tpu_custom_call.1} parent=11 // pred_check_branch
          %170 = sbr.rel (%p168) target = $region20
        $region19: #{tpu_custom_call.1} parent=11 // pred_region
          _
        $region20: #{tpu_custom_call.1} parent=11 // pred_fallthru
          _
      $region12: #{tpu_custom_call.1} parent=5 // pred_fallthru
        _
      %p171 = scmp.lt.s32.totalorder %s16, 4
      // Predicated region
      $region21: #{tpu_custom_call.1} parent=5 // pred_check
        %p172 = pneg %p171
      $region22: #{tpu_custom_call.1} parent=5 // pred_check_branch
        %174 = sbr.rel (%p172) target = $region24
      $region23: #{tpu_custom_call.1} parent=5 // pred_region
        // Predicated region
        $region25: #{tpu_custom_call.1} parent=23 // pred_check
          %p175 = pneg %p48
        $region26: #{tpu_custom_call.1} parent=23 // pred_check_branch
          %177 = sbr.rel (%p175) target = $region28
        $region27: #{tpu_custom_call.1} parent=23 // pred_region
          %s178 = smul.u32 16, %s24
          %p179 = scmp.lt.s32.totalorder %s178, 31
          %s180 = scalar_select %p179, %s178, 31
          %s181 = smul.addr %s180, 4
          %s182 = scalar_lea.vmem %s0, %s181
          %s183 = smul.u32 16, %s24
        $region28: #{tpu_custom_call.1} parent=23 // pred_fallthru
          _
        // Predicated region
        $region29: #{tpu_custom_call.1} parent=23 // pred_check
          %p184 = pneg %p118
        $region30: #{tpu_custom_call.1} parent=23 // pred_check_branch
          %186 = sbr.rel (%p184) target = $region32
        $region31: #{tpu_custom_call.1} parent=23 // pred_region
          %s187 = sand.u32 %s108, 1
          %s188 = scalar_lea.sflag [#allocation3], %s187
          %s189 = sand.u32 %s108, 1
          %s190 = smul.addr %s189, 128
          %s191 = scalar_lea.vmem [#allocation2], %s190
          %s192 = smul.u32 16, %s23
          %s194 = ssub.s32 2048, 2048
          %195 = vsyncadd %s188, %s194
          %s196 = smul.addr %s192, 2
          %s197 = sadd.s32 %s24, %s196
          %s198 = smul.addr %s197, 128
          %s199 = scalar_lea.hbm %s3, %s198
          %s200 = sshll.u32 %s191, 4
          %s201 = int_to_ptr.vmem [resolvable:$true] %s200
          %206 = dma.hbm_to_vmem [thread:$0]  %s199, 2048, %s201, %s188, 256, 128, 8
        $region32: #{tpu_custom_call.1} parent=23 // pred_fallthru
          _
      $region24: #{tpu_custom_call.1} parent=5 // pred_fallthru
        _
      %p207 = scmp.le.s32.totalorder 1, %s16
      %p208 = scmp.lt.s32.totalorder %s16, 5
      %p209 = pnand %p207, %p208
      %p210 = pneg %p209
      // Predicated region
      $region33: #{tpu_custom_call.1} parent=5 // pred_check
        _
      $region34: #{tpu_custom_call.1} parent=5 // pred_check_branch
        %212 = sbr.rel (%p209) target = $region36
      $region35: #{tpu_custom_call.1} parent=5 // pred_region
        %s213 = ssub.s32 %s16, 1
        %s214 = sand.u32 %s111, 1
        %s215 = scalar_lea.sflag [#allocation3], %s214
        %s216 = sand.u32 %s111, 1
        %s217 = smul.addr %s216, 128
        %s218 = scalar_lea.vmem [#allocation2], %s217
        // Predicated region
        $region37: #{tpu_custom_call.1} parent=35 // pred_check
          %p219 = pneg %p124
        $region38: #{tpu_custom_call.1} parent=35 // pred_check_branch
          %221 = sbr.rel (%p219) target = $region40
        $region39: #{tpu_custom_call.1} parent=35 // pred_region
          %222 = dma.done %s215, 2048
        $region40: #{tpu_custom_call.1} parent=35 // pred_fallthru
          _
        %s223 = smul.u32 16, %s26
        %p224 = scmp.lt.s32.totalorder %s223, 31
        %s225 = scalar_select %p224, %s223, 31
        %s226 = smul.addr %s225, 4
        %s227 = scalar_lea.vmem %s0, %s226
        %p228 = pneg %p54
        %p229 = pneg %p51
        %p230 = pneg %p75
        %p231 = pneg %p72
        %p232 = pneg %p96
        %p233 = pneg %p93
        %s234 = sand.u32 %s111, 1
        %s235 = scalar_lea.sflag [#allocation3], %s234
        %s236 = sand.u32 %s111, 1
        %s237 = smul.addr %s236, 128
        %s238 = scalar_lea.vmem [#allocation2], %s237
        %p239 = pneg %p124
        %p240 = pneg %p121
        %p241 = pneg %p150
        %p242 = pneg %p147
        %s243 = sand.u32 %s137, 1
        %s244 = scalar_lea.sflag [#allocation4], %s243
        %s245 = sand.u32 %s137, 1
        %s246 = smul.addr %s245, 128
        %s247 = scalar_lea.vmem [#allocation5], %s246
        %s248 = smul.u32 16, %s26
        %p249 = scmp.lt.s32.totalorder %s248, 31
        %s250 = scalar_select %p249, %s248, 31
        %s251 = smul.addr %s250, 4
        %s252 = scalar_lea.vmem %s0, %s251
        %s253 = smul.u32 16, %s26
        %s254 = smul.u32 16, %s25
        %s255 = smul.u32 16, %s25
        %p257 = scmp.eq.s32.totalorder %s26, 0
        // Predicated region
        $region41: #{tpu_custom_call.1} parent=35 // pred_check
          %p258 = pneg %p257
        $region42: #{tpu_custom_call.1} parent=35 // pred_check_branch
          %260 = sbr.rel (%p258) target = $region44
        $region43: #{tpu_custom_call.1} parent=35 // pred_region
          %261 = vst [vmem:[%s247] sm:$0xff] 0.0
          %262 = vst [vmem:[%s247 + $0x8] sm:$0xff] 0.0
          %263 = vst [vmem:[%s247 + $0x10] sm:$0xff] 0.0
          %264 = vst [vmem:[%s247 + $0x18] sm:$0xff] 0.0
          %265 = vst [vmem:[%s247 + $0x20] sm:$0xff] 0.0
          %266 = vst [vmem:[%s247 + $0x28] sm:$0xff] 0.0
          %267 = vst [vmem:[%s247 + $0x30] sm:$0xff] 0.0
          %268 = vst [vmem:[%s247 + $0x38] sm:$0xff] 0.0
          %269 = vst [vmem:[%s247 + $0x40] sm:$0xff] 0.0
          %270 = vst [vmem:[%s247 + $0x48] sm:$0xff] 0.0
          %271 = vst [vmem:[%s247 + $0x50] sm:$0xff] 0.0
          %272 = vst [vmem:[%s247 + $0x58] sm:$0xff] 0.0
          %273 = vst [vmem:[%s247 + $0x60] sm:$0xff] 0.0
          %274 = vst [vmem:[%s247 + $0x68] sm:$0xff] 0.0
          %275 = vst [vmem:[%s247 + $0x70] sm:$0xff] 0.0
          %276 = vst [vmem:[%s247 + $0x78] sm:$0xff] 0.0
        $region44: #{tpu_custom_call.1} parent=35 // pred_fallthru
          _
        %v277 = vld [vmem:[%s252] sm:$0xf]
        %v278 = vld [vmem:[%s252 + $0x4] sm:$0xf]
        %v279 = vld [vmem:[%s252 + $0x8] sm:$0xf]
        %v280 = vld [vmem:[%s252 + $0xc] sm:$0xf]
        %v281 = vld [vmem:[%s252 + $0x10] sm:$0xf]
        %v282 = vld [vmem:[%s252 + $0x14] sm:$0xf]
        %v283 = vld [vmem:[%s252 + $0x18] sm:$0xf]
        %v284 = vld [vmem:[%s252 + $0x1c] sm:$0xf]
        %v285 = vld [vmem:[%s252 + $0x20] sm:$0xf]
        %v286 = vld [vmem:[%s252 + $0x24] sm:$0xf]
        %v287 = vld [vmem:[%s252 + $0x28] sm:$0xf]
        %v288 = vld [vmem:[%s252 + $0x2c] sm:$0xf]
        %v289 = vld [vmem:[%s252 + $0x30] sm:$0xf]
        %v290 = vld [vmem:[%s252 + $0x34] sm:$0xf]
        %v291 = vld [vmem:[%s252 + $0x38] sm:$0xf]
        %v292 = vld [vmem:[%s252 + $0x3c] sm:$0xf]
        %v293 = vld [vmem:[%s1] sm:$0xf]
        %v294 = vld [vmem:[%s1 + $0x4] sm:$0xf]
        %v295 = vld [vmem:[%s1 + $0x8] sm:$0xf]
        %v296 = vld [vmem:[%s1 + $0xc] sm:$0xf]
        %v297 = vld [vmem:[%s2] sm:$0x1]
        %v299 = vlaneseq
        %v300 = vshrl.u32 %v299, 7
        %v301 = vsub.s32 0, %v300
        %v302 = vrot.slane %v297, %v301
        %v320 = vunpack.c.l.b16 %v277
        %v321 = vunpack.c.l.b16 %v278
        %v322 = vunpack.c.l.b16 %v279
        %v323 = vunpack.c.l.b16 %v280
        %v324 = vunpack.c.l.b16 %v281
        %v325 = vunpack.c.l.b16 %v282
        %v326 = vunpack.c.l.b16 %v283
        %v327 = vunpack.c.l.b16 %v284
        %v328 = vunpack.c.l.b16 %v285
        %v329 = vunpack.c.l.b16 %v286
        %v330 = vunpack.c.l.b16 %v287
        %v331 = vunpack.c.l.b16 %v288
        %v332 = vunpack.c.l.b16 %v289
        %v333 = vunpack.c.l.b16 %v290
        %v334 = vunpack.c.l.b16 %v291
        %v335 = vunpack.c.l.b16 %v292
        %v336 = vpack.c.b16 %v321, %v320
        %v337 = vpack.c.b16 %v323, %v322
        %v338 = vpack.c.b16 %v325, %v324
        %v339 = vpack.c.b16 %v327, %v326
        %v340 = vpack.c.b16 %v329, %v328
        %v341 = vpack.c.b16 %v331, %v330
        %v342 = vpack.c.b16 %v333, %v332
        %v343 = vpack.c.b16 %v335, %v334
        %v348 = vunpack.c.l.b16 %v293
        %v349 = vunpack.c.l.b16 %v294
        %v350 = vunpack.c.l.b16 %v295
        %v351 = vunpack.c.l.b16 %v296
        %v352 = vpack.c.b16 %v349, %v348
        %v353 = vpack.c.b16 %v351, %v350
        %vm356 = vcmask 261120
        %v358 = vsel %vm356, %v336, 0
        %v361 = vsel %vm356, %v337, 0
        %v364 = vsel %vm356, %v338, 0
        %v367 = vsel %vm356, %v339, 0
        %v370 = vsel %vm356, %v340, 0
        %v373 = vsel %vm356, %v341, 0
        %v376 = vsel %vm356, %v342, 0
        %v379 = vsel %vm356, %v343, 0
        %381 = vmatprep.subr.bf16.mxu0 0
        %382 = vmatpush1.bf16.msra.mxu0 %v352
        %383 = vmatprep.subr.bf16.mxu0 0
        %384 = vmatpush1.bf16.msra.mxu0 %v353
        %385 = vmatprep.subr.bf16.mxu0 0
        %386 = vmatpush1.bf16.msra.mxu0 0
        %387 = vmatprep.subr.bf16.mxu0 0
        %388 = vmatpush1.bf16.msra.mxu0 0
        %389 = vmatprep.subr.bf16.mxu0 0
        %390 = vmatpush1.bf16.msra.mxu0 0
        %391 = vmatprep.subr.bf16.mxu0 0
        %392 = vmatpush1.bf16.msra.mxu0 0
        %393 = vmatprep.subr.bf16.mxu0 0
        %394 = vmatpush1.bf16.msra.mxu0 0
        %395 = vmatprep.subr.bf16.mxu0 0
        %396 = vmatpush1.bf16.msra.mxu0 0
        %397 = vmatprep.subr.bf16.mxu0 0
        %398 = vmatpush1.bf16.msra.mxu0 0
        %399 = vmatprep.subr.bf16.mxu0 0
        %400 = vmatpush1.bf16.msra.mxu0 0
        %401 = vmatprep.subr.bf16.mxu0 0
        %402 = vmatpush1.bf16.msra.mxu0 0
        %403 = vmatprep.subr.bf16.mxu0 0
        %404 = vmatpush1.bf16.msra.mxu0 0
        %405 = vmatprep.subr.bf16.mxu0 0
        %406 = vmatpush1.bf16.msra.mxu0 0
        %407 = vmatprep.subr.bf16.mxu0 0
        %408 = vmatpush1.bf16.msra.mxu0 0
        %409 = vmatprep.subr.bf16.mxu0 0
        %410 = vmatpush1.bf16.msra.mxu0 0
        %411 = vmatprep.subr.bf16.mxu0 0
        %412 = vmatpush1.bf16.msra.mxu0 0
        %413 = vmatprep.mubr.bf16.mxu0 0
        %414 = vmatmul.mubr.bf16.gmra.mrb[0].mxu0 %v358
        %v415 = vpop.f32.mrb[0].mxu0
        %v416 = vadd.f32 %v302, %v415
        %v417 = vpop.f32.mrb[0].mxu0
        %v418 = vpop.f32.mrb[0].mxu0
        %v419 = vadd.f32 %v302, %v418
        %v420 = vpop.f32.mrb[0].mxu0
        %421 = vmatprep.mubr.bf16.mxu0 0
        %422 = vmatmul.mubr.bf16.gmra.mrb[0].mxu0 %v361
        %v423 = vpop.f32.mrb[0].mxu0
        %v424 = vadd.f32 %v302, %v423
        %v425 = vpop.f32.mrb[0].mxu0
        %v426 = vpop.f32.mrb[0].mxu0
        %v427 = vadd.f32 %v302, %v426
        %v428 = vpop.f32.mrb[0].mxu0
        %429 = vmatprep.mubr.bf16.mxu0 0
        %430 = vmatmul.mubr.bf16.gmra.mrb[0].mxu0 %v364
        %v431 = vpop.f32.mrb[0].mxu0
        %v432 = vadd.f32 %v302, %v431
        %v433 = vpop.f32.mrb[0].mxu0
        %v434 = vpop.f32.mrb[0].mxu0
        %v435 = vadd.f32 %v302, %v434
        %v436 = vpop.f32.mrb[0].mxu0
        %437 = vmatprep.mubr.bf16.mxu0 0
        %438 = vmatmul.mubr.bf16.gmra.mrb[0].mxu0 %v367
        %v439 = vpop.f32.mrb[0].mxu0
        %v440 = vadd.f32 %v302, %v439
        %v441 = vpop.f32.mrb[0].mxu0
        %v442 = vpop.f32.mrb[0].mxu0
        %v443 = vadd.f32 %v302, %v442
        %v444 = vpop.f32.mrb[0].mxu0
        %445 = vmatprep.mubr.bf16.mxu0 0
        %446 = vmatmul.mubr.bf16.gmra.mrb[0].mxu0 %v370
        %v447 = vpop.f32.mrb[0].mxu0
        %v448 = vadd.f32 %v302, %v447
        %v449 = vpop.f32.mrb[0].mxu0
        %v450 = vpop.f32.mrb[0].mxu0
        %v451 = vadd.f32 %v302, %v450
        %v452 = vpop.f32.mrb[0].mxu0
        %453 = vmatprep.mubr.bf16.mxu0 0
        %454 = vmatmul.mubr.bf16.gmra.mrb[0].mxu0 %v373
        %v455 = vpop.f32.mrb[0].mxu0
        %v456 = vadd.f32 %v302, %v455
        %v457 = vpop.f32.mrb[0].mxu0
        %v458 = vpop.f32.mrb[0].mxu0
        %v459 = vadd.f32 %v302, %v458
        %v460 = vpop.f32.mrb[0].mxu0
        %461 = vmatprep.mubr.bf16.mxu0 0
        %462 = vmatmul.mubr.bf16.gmra.mrb[0].mxu0 %v376
        %v463 = vpop.f32.mrb[0].mxu0
        %v464 = vadd.f32 %v302, %v463
        %v465 = vpop.f32.mrb[0].mxu0
        %v466 = vpop.f32.mrb[0].mxu0
        %v467 = vadd.f32 %v302, %v466
        %v468 = vpop.f32.mrb[0].mxu0
        %469 = vmatprep.mubr.bf16.mxu0 0
        %470 = vmatmul.mubr.bf16.gmra.mrb[0].mxu0 %v379
        %v471 = vpop.f32.mrb[0].mxu0
        %v472 = vadd.f32 %v302, %v471
        %v473 = vpop.f32.mrb[0].mxu0
        %v474 = vpop.f32.mrb[0].mxu0
        %v475 = vadd.f32 %v302, %v474
        %v476 = vpop.f32.mrb[0].mxu0
        %477 = vdwg.mxu0
        %v478 = vmax.f32 %v416, 0.0
        %v479 = vmax.f32 %v419, 0.0
        %v480 = vmax.f32 %v424, 0.0
        %v481 = vmax.f32 %v427, 0.0
        %v482 = vmax.f32 %v432, 0.0
        %v483 = vmax.f32 %v435, 0.0
        %v484 = vmax.f32 %v440, 0.0
        %v485 = vmax.f32 %v443, 0.0
        %v486 = vmax.f32 %v448, 0.0
        %v487 = vmax.f32 %v451, 0.0
        %v488 = vmax.f32 %v456, 0.0
        %v489 = vmax.f32 %v459, 0.0
        %v490 = vmax.f32 %v464, 0.0
        %v491 = vmax.f32 %v467, 0.0
        %v492 = vmax.f32 %v472, 0.0
        %v493 = vmax.f32 %v475, 0.0
        %v494 = vpack.c.bf16 %v479, %v478
        %v495 = vpack.c.bf16 %v481, %v480
        %v496 = vpack.c.bf16 %v483, %v482
        %v497 = vpack.c.bf16 %v485, %v484
        %v498 = vpack.c.bf16 %v487, %v486
        %v499 = vpack.c.bf16 %v489, %v488
        %v500 = vpack.c.bf16 %v491, %v490
        %v501 = vpack.c.bf16 %v493, %v492
        %v502 = vld [vmem:[%s247] sm:$0xff]
        %v503 = vld [vmem:[%s247 + $0x8] sm:$0xff]
        %v504 = vld [vmem:[%s247 + $0x10] sm:$0xff]
        %v505 = vld [vmem:[%s247 + $0x18] sm:$0xff]
        %v506 = vld [vmem:[%s247 + $0x20] sm:$0xff]
        %v507 = vld [vmem:[%s247 + $0x28] sm:$0xff]
        %v508 = vld [vmem:[%s247 + $0x30] sm:$0xff]
        %v509 = vld [vmem:[%s247 + $0x38] sm:$0xff]
        %v510 = vld [vmem:[%s247 + $0x40] sm:$0xff]
        %v511 = vld [vmem:[%s247 + $0x48] sm:$0xff]
        %v512 = vld [vmem:[%s247 + $0x50] sm:$0xff]
        %v513 = vld [vmem:[%s247 + $0x58] sm:$0xff]
        %v514 = vld [vmem:[%s247 + $0x60] sm:$0xff]
        %v515 = vld [vmem:[%s247 + $0x68] sm:$0xff]
        %v516 = vld [vmem:[%s247 + $0x70] sm:$0xff]
        %v517 = vld [vmem:[%s247 + $0x78] sm:$0xff]
        %v518 = vld [vmem:[%s218] sm:$0xff]
        %v519 = vld [vmem:[%s218 + $0x8] sm:$0xff]
        %v520 = vld [vmem:[%s218 + $0x10] sm:$0xff]
        %v521 = vld [vmem:[%s218 + $0x18] sm:$0xff]
        %v522 = vld [vmem:[%s218 + $0x20] sm:$0xff]
        %v523 = vld [vmem:[%s218 + $0x28] sm:$0xff]
        %v524 = vld [vmem:[%s218 + $0x30] sm:$0xff]
        %v525 = vld [vmem:[%s218 + $0x38] sm:$0xff]
        %v526 = vld [vmem:[%s218 + $0x40] sm:$0xff]
        %v527 = vld [vmem:[%s218 + $0x48] sm:$0xff]
        %v528 = vld [vmem:[%s218 + $0x50] sm:$0xff]
        %v529 = vld [vmem:[%s218 + $0x58] sm:$0xff]
        %v530 = vld [vmem:[%s218 + $0x60] sm:$0xff]
        %v531 = vld [vmem:[%s218 + $0x68] sm:$0xff]
        %v532 = vld [vmem:[%s218 + $0x70] sm:$0xff]
        %v533 = vld [vmem:[%s218 + $0x78] sm:$0xff]
        %v534 = vpack.c.bf16 %v519, %v518
        %v535 = vpack.c.bf16 %v521, %v520
        %v536 = vpack.c.bf16 %v523, %v522
        %v537 = vpack.c.bf16 %v525, %v524
        %v538 = vpack.c.bf16 %v527, %v526
        %v539 = vpack.c.bf16 %v529, %v528
        %v540 = vpack.c.bf16 %v531, %v530
        %v541 = vpack.c.bf16 %v533, %v532
        %542 = vmatprep.subr.bf16.mxu0 0
        %543 = vmatpush1.bf16.msra.mxu0 %v494
        %544 = vmatprep.subr.bf16.mxu0 0
        %545 = vmatpush1.bf16.msra.mxu0 %v495
        %546 = vmatprep.subr.bf16.mxu0 0
        %547 = vmatpush1.bf16.msra.mxu0 %v496
        %548 = vmatprep.subr.bf16.mxu0 0
        %549 = vmatpush1.bf16.msra.mxu0 %v497
        %550 = vmatprep.subr.bf16.mxu0 0
        %551 = vmatpush1.bf16.msra.mxu0 %v498
        %552 = vmatprep.subr.bf16.mxu0 0
        %553 = vmatpush1.bf16.msra.mxu0 %v499
        %554 = vmatprep.subr.bf16.mxu0 0
        %555 = vmatpush1.bf16.msra.mxu0 %v500
        %556 = vmatprep.subr.bf16.mxu0 0
        %557 = vmatpush1.bf16.msra.mxu0 %v501
        %558 = vmatprep.subr.bf16.mxu0 0
        %559 = vmatpush1.bf16.msra.mxu0 0
        %560 = vmatprep.subr.bf16.mxu0 0
        %561 = vmatpush1.bf16.msra.mxu0 0
        %562 = vmatprep.subr.bf16.mxu0 0
        %563 = vmatpush1.bf16.msra.mxu0 0
        %564 = vmatprep.subr.bf16.mxu0 0
        %565 = vmatpush1.bf16.msra.mxu0 0
        %566 = vmatprep.subr.bf16.mxu0 0
        %567 = vmatpush1.bf16.msra.mxu0 0
        %568 = vmatprep.subr.bf16.mxu0 0
        %569 = vmatpush1.bf16.msra.mxu0 0
        %570 = vmatprep.subr.bf16.mxu0 0
        %571 = vmatpush1.bf16.msra.mxu0 0
        %572 = vmatprep.subr.bf16.mxu0 0
        %573 = vmatpush1.bf16.msra.mxu0 0
        %574 = vmatprep.mubr.bf16.mxu0 0
        %575 = vmatmul.mubr.bf16.gmra.mrb[0].mxu0 %v534
        %v576 = vpop.f32.mrb[0].mxu0
        %v577 = vadd.f32 0.0, %v576
        %v578 = vpop.f32.mrb[0].mxu0
        %v579 = vpop.f32.mrb[0].mxu0
        %v580 = vadd.f32 0.0, %v579
        %v581 = vpop.f32.mrb[0].mxu0
        %582 = vmatprep.mubr.bf16.mxu0 0
        %583 = vmatmul.mubr.bf16.gmra.mrb[0].mxu0 %v535
        %v584 = vpop.f32.mrb[0].mxu0
        %v585 = vadd.f32 0.0, %v584
        %v586 = vpop.f32.mrb[0].mxu0
        %v587 = vpop.f32.mrb[0].mxu0
        %v588 = vadd.f32 0.0, %v587
        %v589 = vpop.f32.mrb[0].mxu0
        %590 = vmatprep.mubr.bf16.mxu0 0
        %591 = vmatmul.mubr.bf16.gmra.mrb[0].mxu0 %v536
        %v592 = vpop.f32.mrb[0].mxu0
        %v593 = vadd.f32 0.0, %v592
        %v594 = vpop.f32.mrb[0].mxu0
        %v595 = vpop.f32.mrb[0].mxu0
        %v596 = vadd.f32 0.0, %v595
        %v597 = vpop.f32.mrb[0].mxu0
        %598 = vmatprep.mubr.bf16.mxu0 0
        %599 = vmatmul.mubr.bf16.gmra.mrb[0].mxu0 %v537
        %v600 = vpop.f32.mrb[0].mxu0
        %v601 = vadd.f32 0.0, %v600
        %v602 = vpop.f32.mrb[0].mxu0
        %v603 = vpop.f32.mrb[0].mxu0
        %v604 = vadd.f32 0.0, %v603
        %v605 = vpop.f32.mrb[0].mxu0
        %606 = vmatprep.mubr.bf16.mxu0 0
        %607 = vmatmul.mubr.bf16.gmra.mrb[0].mxu0 %v538
        %v608 = vpop.f32.mrb[0].mxu0
        %v609 = vadd.f32 0.0, %v608
        %v610 = vpop.f32.mrb[0].mxu0
        %v611 = vpop.f32.mrb[0].mxu0
        %v612 = vadd.f32 0.0, %v611
        %v613 = vpop.f32.mrb[0].mxu0
        %614 = vmatprep.mubr.bf16.mxu0 0
        %615 = vmatmul.mubr.bf16.gmra.mrb[0].mxu0 %v539
        %v616 = vpop.f32.mrb[0].mxu0
        %v617 = vadd.f32 0.0, %v616
        %v618 = vpop.f32.mrb[0].mxu0
        %v619 = vpop.f32.mrb[0].mxu0
        %v620 = vadd.f32 0.0, %v619
        %v621 = vpop.f32.mrb[0].mxu0
        %622 = vmatprep.mubr.bf16.mxu0 0
        %623 = vmatmul.mubr.bf16.gmra.mrb[0].mxu0 %v540
        %v624 = vpop.f32.mrb[0].mxu0
        %v625 = vadd.f32 0.0, %v624
        %v626 = vpop.f32.mrb[0].mxu0
        %v627 = vpop.f32.mrb[0].mxu0
        %v628 = vadd.f32 0.0, %v627
        %v629 = vpop.f32.mrb[0].mxu0
        %630 = vmatprep.mubr.bf16.mxu0 0
        %631 = vmatmul.mubr.bf16.gmra.mrb[0].mxu0 %v541
        %v632 = vpop.f32.mrb[0].mxu0
        %v633 = vadd.f32 0.0, %v632
        %v634 = vpop.f32.mrb[0].mxu0
        %v635 = vpop.f32.mrb[0].mxu0
        %v636 = vadd.f32 0.0, %v635
        %v637 = vpop.f32.mrb[0].mxu0
        %638 = vdwg.mxu0
        %v639 = vadd.f32 %v502, %v577
        %v640 = vadd.f32 %v503, %v580
        %v641 = vadd.f32 %v504, %v585
        %v642 = vadd.f32 %v505, %v588
        %v643 = vadd.f32 %v506, %v593
        %v644 = vadd.f32 %v507, %v596
        %v645 = vadd.f32 %v508, %v601
        %v646 = vadd.f32 %v509, %v604
        %v647 = vadd.f32 %v510, %v609
        %v648 = vadd.f32 %v511, %v612
        %v649 = vadd.f32 %v512, %v617
        %v650 = vadd.f32 %v513, %v620
        %v651 = vadd.f32 %v514, %v625
        %v652 = vadd.f32 %v515, %v628
        %v653 = vadd.f32 %v516, %v633
        %v654 = vadd.f32 %v517, %v636
        %655 = vst [vmem:[%s247] sm:$0xff] %v639
        %656 = vst [vmem:[%s247 + $0x8] sm:$0xff] %v640
        %657 = vst [vmem:[%s247 + $0x10] sm:$0xff] %v641
        %658 = vst [vmem:[%s247 + $0x18] sm:$0xff] %v642
        %659 = vst [vmem:[%s247 + $0x20] sm:$0xff] %v643
        %660 = vst [vmem:[%s247 + $0x28] sm:$0xff] %v644
        %661 = vst [vmem:[%s247 + $0x30] sm:$0xff] %v645
        %662 = vst [vmem:[%s247 + $0x38] sm:$0xff] %v646
        %663 = vst [vmem:[%s247 + $0x40] sm:$0xff] %v647
        %664 = vst [vmem:[%s247 + $0x48] sm:$0xff] %v648
        %665 = vst [vmem:[%s247 + $0x50] sm:$0xff] %v649
        %666 = vst [vmem:[%s247 + $0x58] sm:$0xff] %v650
        %667 = vst [vmem:[%s247 + $0x60] sm:$0xff] %v651
        %668 = vst [vmem:[%s247 + $0x68] sm:$0xff] %v652
        %669 = vst [vmem:[%s247 + $0x70] sm:$0xff] %v653
        %670 = vst [vmem:[%s247 + $0x78] sm:$0xff] %v654
        %s671 = sand.u32 %s137, 1
        %s672 = scalar_lea.sflag [#allocation4], %s671
        %s673 = sand.u32 %s137, 1
        %s674 = smul.addr %s673, 128
        %s675 = scalar_lea.vmem [#allocation5], %s674
        // Predicated region
        $region45: #{tpu_custom_call.1} parent=35 // pred_check
          %p676 = pneg %p147
        $region46: #{tpu_custom_call.1} parent=35 // pred_check_branch
          %678 = sbr.rel (%p676) target = $region48
        $region47: #{tpu_custom_call.1} parent=35 // pred_region
          %s679 = smul.u32 16, %s25
          %s681 = ssub.s32 2048, 2048
          %682 = vsyncadd %s672, %s681
          %s683 = smul.addr %s679, 128
          %s684 = scalar_lea.hbm %s4, %s683
          %s685 = sshll.u32 %s675, 4
          %s686 = int_to_ptr.vmem [resolvable:$true] %s685
          %691 = dma.vmem_to_hbm [thread:$0]  %s686, 2048, %s684, %s672, 128, 128, 8
        $region48: #{tpu_custom_call.1} parent=35 // pred_fallthru
          _
      $region36: #{tpu_custom_call.1} parent=5 // pred_fallthru
        _
      %p692 = scmp.le.s32.totalorder 2, %s16
      // Predicated region
      $region49: #{tpu_custom_call.1} parent=5 // pred_check
        %p693 = pneg %p692
      $region50: #{tpu_custom_call.1} parent=5 // pred_check_branch
        %695 = sbr.rel (%p693) target = $region52
      $region51: #{tpu_custom_call.1} parent=5 // pred_region
        %s696 = ssub.s32 %s16, 2
        // Predicated region
        $region53: #{tpu_custom_call.1} parent=51 // pred_check
          %p697 = pneg %p153
        $region54: #{tpu_custom_call.1} parent=51 // pred_check_branch
          %699 = sbr.rel (%p697) target = $region56
        $region55: #{tpu_custom_call.1} parent=51 // pred_region
          %s700 = sand.u32 %s138, 1
          %s701 = scalar_lea.sflag [#allocation4], %s700
          %s702 = sand.u32 %s138, 1
          %s703 = smul.addr %s702, 128
          %s704 = scalar_lea.vmem [#allocation5], %s703
          %705 = dma.done %s701, 2048
        $region56: #{tpu_custom_call.1} parent=51 // pred_fallthru
          _
      $region52: #{tpu_custom_call.1} parent=5 // pred_fallthru
        _
    $region6: #{tpu_custom_call.1} parent=1 // loop_footer
      %s20 = sadd.s32 1, %s16
    $region7: #{tpu_custom_call.1} parent=1 // loop_footer_branch
      %15 = sbr.rel target = $region3
    $region8: #{tpu_custom_call.1} parent=1 // loop_exit
      _
    %706 = vsyncpa [#allocation3], 1
    %s707 = scalar_lea.sflag [#allocation3], 1
    %708 = vsyncpa %s707, 1
    %709 = vsyncpa [#allocation4], 1
    %s710 = scalar_lea.sflag [#allocation4], 1
    %711 = vsyncpa %s710, 1

</llo_original>
